<compile_context>
chip_gen: v5e
topology: v5e:2x2
jax: 0.10.0
libtpu: 0.0.40
codegen_flags: <defaults>
</compile_context>

<pallas_src>
import functools

import jax
import jax.numpy as jnp
from jax.experimental import pallas as pl
from jax.experimental.pallas import tpu as pltpu

_LANE = 128
_SUBLANE = 8
_MAX_TB = 256  # max batch rows per grid step


def _round_up(n, m):
    return (n + m - 1) // m * m


def _hash_u32(x):
    """lowbias32-style mixer: shifts / xors / 32-bit multiplies only (VPU-friendly)."""
    x = (x ^ (x >> 16)) * jnp.uint32(0x7FEB352D)
    x = (x ^ (x >> 15)) * jnp.uint32(0x846CA68B)
    x = x ^ (x >> 16)
    return x


def mlp3_dropout_kernel(seed_ref, x_ref, w1_ref, b1_ref, w2_ref, b2_ref,
                        w3_ref, b3_ref, o_ref, *, keep_prob, training, tb, l_pad):
    # bf16 MXU operands, f32 accumulation; ReLU / dropout mask in f32 on the VPU.
    x = x_ref[...].astype(jnp.bfloat16)

    if training:
        # Counter grid built once per grid step, shared by both dropout layers.
        seed_u32 = seed_ref[0].astype(jnp.uint32)
        row_base = (pl.program_id(0) * tb).astype(jnp.uint32)
        r = jax.lax.broadcasted_iota(jnp.int32, (tb, l_pad), 0).astype(jnp.uint32) + row_base
        c = jax.lax.broadcasted_iota(jnp.int32, (tb, l_pad), 1).astype(jnp.uint32)
        ctr = r * jnp.uint32(l_pad) + c
        thresh = jnp.uint32(min(int(round(keep_prob * 2.0 ** 32)), 2 ** 32 - 1))
        k1 = seed_u32 + jnp.uint32((1 * 0x9E3779B9) % (1 << 32))
        k2 = seed_u32 + jnp.uint32((2 * 0x9E3779B9) % (1 << 32))

    h = jnp.dot(x, w1_ref[...], preferred_element_type=jnp.float32) + b1_ref[...]
    h = jnp.maximum(h, 0.0)
    if training:
        m1 = _hash_u32(ctr + k1) < thresh          # P(keep) = keep_prob
        h = jnp.where(m1, h, 0.0)                  # 1/keep rescale folded into w2

    h = jnp.dot(h.astype(jnp.bfloat16), w2_ref[...],
                preferred_element_type=jnp.float32) + b2_ref[...]
    h = jnp.maximum(h, 0.0)
    if training:
        m2 = _hash_u32(ctr + k2) < thresh
        h = jnp.where(m2, h, 0.0)                  # 1/keep rescale folded into w3

    out = jnp.dot(h.astype(jnp.bfloat16), w3_ref[...],
                  preferred_element_type=jnp.float32) + b3_ref[...]
    o_ref[...] = out.astype(o_ref.dtype)


def prepare_params(params, *, training=False, p_drop=0.1):
    """One-time weight prep (hoist out of the training step):
    transpose (out,in)->(in,out), fold dropout 1/keep into the *next* layer's
    weights, zero-pad every feature dim to 128 lanes, cast weights to bf16."""
    w1, b1, w2, b2, w3, b3 = params
    dim_in, l, dim_out = w1.shape[1], w1.shape[0], w3.shape[0]
    din_p, l_p, dout_p = (_round_up(d, _LANE) for d in (dim_in, l, dim_out))
    keep = 1.0 - p_drop
    s = (1.0 / keep) if training else 1.0

    def pad2(a, r, c):
        return jnp.pad(a, ((0, r - a.shape[0]), (0, c - a.shape[1])))

    w1p = pad2(w1.T.astype(jnp.float32), din_p, l_p).astype(jnp.bfloat16)
    w2p = pad2(w2.T.astype(jnp.float32) * s, l_p, l_p).astype(jnp.bfloat16)
    w3p = pad2(w3.T.astype(jnp.float32) * s, l_p, dout_p).astype(jnp.bfloat16)
    b1p = pad2(b1.reshape(1, -1).astype(jnp.float32), 1, l_p)
    b2p = pad2(b2.reshape(1, -1).astype(jnp.float32), 1, l_p)
    b3p = pad2(b3.reshape(1, -1).astype(jnp.float32), 1, dout_p)

    meta = dict(dim_in=dim_in, l=l, dim_out=dim_out,
                din_p=din_p, l_p=l_p, dout_p=dout_p,
                training=training, p_drop=p_drop)
    return (w1p, b1p, w2p, b2p, w3p, b3p), meta


def mlp3_dropout_forward(x, prepared, meta, *, seed=0):
    w1p, b1p, w2p, b2p, w3p, b3p = prepared
    B, dim_in = x.shape
    din_p, l_p, dout_p = meta["din_p"], meta["l_p"], meta["dout_p"]
    training, p_drop = meta["training"], meta["p_drop"]

    # Batch tiling: <=256 rows per grid step; weights/biases stay VMEM-resident
    # (constant index_maps -> no re-DMA across grid steps).
    tb = _MAX_TB if B >= _MAX_TB else _round_up(B, _SUBLANE)
    b_pad = _round_up(B, tb)
    xp = jnp.pad(x, ((0, b_pad - B), (0, din_p - dim_in)))

    seed_arr = jnp.asarray([seed], dtype=jnp.int32)
    kernel = functools.partial(mlp3_dropout_kernel, keep_prob=1.0 - p_drop,
                               training=training, tb=tb, l_pad=l_p)

    const = lambda i, seed_ref: (0, 0)  # weights/biases: same block every step
    out = pl.pallas_call(
        kernel,
        out_shape=jax.ShapeDtypeStruct((b_pad, dout_p), jnp.float32),
        grid_spec=pltpu.PrefetchScalarGridSpec(
            num_scalar_prefetch=1,
            grid=(b_pad // tb,),
            in_specs=[
                pl.BlockSpec((tb, din_p), lambda i, seed_ref: (i, 0)),
                pl.BlockSpec((din_p, l_p), const),
                pl.BlockSpec((1, l_p), const),
                pl.BlockSpec((l_p, l_p), const),
                pl.BlockSpec((1, l_p), const),
                pl.BlockSpec((l_p, dout_p), const),
                pl.BlockSpec((1, dout_p), const),
            ],
            out_specs=pl.BlockSpec((tb, dout_p), lambda i, seed_ref: (i, 0)),
        ),
        compiler_params=pltpu.CompilerParams(
            dimension_semantics=("parallel",),      # megacore on v7x, no-op elsewhere
            vmem_limit_bytes=48 * 1024 * 1024,
        ),
    )(seed_arr, xp, w1p, b1p, w2p, b2p, w3p, b3p)

    return out[:B, :meta["dim_out"]]


def init_params(key, dim_in, l, dim_out):
    """Deterministic init mimicking nn.Linear's U(-1/sqrt(fan_in), 1/sqrt(fan_in))."""
    ks = jax.random.split(key, 6)

    def lin(kw, kb, fan_in, fan_out):
        bound = 1.0 / jnp.sqrt(fan_in)
        w = jax.random.uniform(kw, (fan_out, fan_in), jnp.float32, -bound, bound)
        b = jax.random.uniform(kb, (fan_out,), jnp.float32, -bound, bound)
        return w, b

    w1, b1 = lin(ks[0], ks[1], dim_in, l)
    w2, b2 = lin(ks[2], ks[3], l, l)
    w3, b3 = lin(ks[4], ks[5], l, dim_out)
    return (w1, b1, w2, b2, w3, b3)


def reference_eval(x, params):
    """Pure-JAX eval-mode reference (dropout = identity), matching the kernel's
    bf16-operand / f32-accumulate matmul numerics."""
    w1, b1, w2, b2, w3, b3 = params
    bf = jnp.bfloat16
    h = jnp.maximum(jnp.dot(x.astype(bf), w1.T.astype(bf),
                            preferred_element_type=jnp.float32) + b1, 0.0)
    h = jnp.maximum(jnp.dot(h.astype(bf), w2.T.astype(bf),
                            preferred_element_type=jnp.float32) + b2, 0.0)
    return jnp.dot(h.astype(bf), w3.T.astype(bf),
                   preferred_element_type=jnp.float32) + b3


if __name__ == "__main__":
    dim_in, l, dim_out = 32, 64, 16
    batch = 8

    key = jax.random.PRNGKey(0)
    kx, kp = jax.random.split(key)
    x = jax.random.normal(kx, (batch, dim_in), jnp.float32)
    params = init_params(kp, dim_in, l, dim_out)

    # eval mode: dropout is identity -> check numerics against pure-JAX reference
    prep_eval, meta_eval = prepare_params(params, training=False, p_drop=0.1)
    y_eval = jax.block_until_ready(mlp3_dropout_forward(x, prep_eval, meta_eval))
    y_ref = reference_eval(x, params)
    assert y_eval.shape == (batch, dim_out)
    assert jnp.allclose(y_eval, y_ref, atol=2e-2, rtol=2e-2), "eval-mode mismatch"

    # training mode: in-kernel dropout (stochastic but deterministic per seed)
    prep_tr, meta_tr = prepare_params(params, training=True, p_drop=0.1)
    y_tr1 = jax.block_until_ready(mlp3_dropout_forward(x, prep_tr, meta_tr, seed=123))
    y_tr2 = jax.block_until_ready(mlp3_dropout_forward(x, prep_tr, meta_tr, seed=123))
    assert y_tr1.shape == (batch, dim_out)
    assert jnp.all(jnp.isfinite(y_tr1))
    assert jnp.allclose(y_tr1, y_tr2), "training-mode not deterministic per seed"

    print("KERNEL_OK")
</pallas_src>

<mosaic_0001>
module attributes {stable_mosaic.version = 11 : i64} {
  func.func @mlp3_dropout_kernel(%arg0: i32, %arg1: memref<1xi32, #tpu.memory_space<smem>>, %arg2: memref<8x128xf32, #tpu.memory_space<vmem>>, %arg3: memref<128x128xbf16, #tpu.memory_space<vmem>>, %arg4: memref<1x128xf32, #tpu.memory_space<vmem>>, %arg5: memref<128x128xbf16, #tpu.memory_space<vmem>>, %arg6: memref<1x128xf32, #tpu.memory_space<vmem>>, %arg7: memref<128x128xbf16, #tpu.memory_space<vmem>>, %arg8: memref<1x128xf32, #tpu.memory_space<vmem>>, %arg9: memref<8x128xf32, #tpu.memory_space<vmem>>) attributes {dimension_semantics = [#tpu.dimension_semantics<parallel>], iteration_bounds = array<i64: 1>, scalar_prefetch = 1 : i64, scratch_operands = 0 : i64, tpu.core_type = #tpu.core_type<tc>, window_params = [{transform_indices = @transform_0, window_bounds = array<i64: 8, 128>}, {pipeline_mode = #tpu.pipeline_mode<synchronous>, transform_indices = @transform_1, window_bounds = array<i64: 128, 128>}, {pipeline_mode = #tpu.pipeline_mode<synchronous>, transform_indices = @transform_2, window_bounds = array<i64: 1, 128>}, {pipeline_mode = #tpu.pipeline_mode<synchronous>, transform_indices = @transform_3, window_bounds = array<i64: 128, 128>}, {pipeline_mode = #tpu.pipeline_mode<synchronous>, transform_indices = @transform_4, window_bounds = array<i64: 1, 128>}, {pipeline_mode = #tpu.pipeline_mode<synchronous>, transform_indices = @transform_5, window_bounds = array<i64: 128, 128>}, {pipeline_mode = #tpu.pipeline_mode<synchronous>, transform_indices = @transform_6, window_bounds = array<i64: 1, 128>}, {transform_indices = @transform_7, window_bounds = array<i64: 8, 128>}]} {
    %c0 = arith.constant 0 : index
    %c0_0 = arith.constant 0 : index
    %0 = vector.load %arg2[%c0, %c0_0] : memref<8x128xf32, #tpu.memory_space<vmem>>, vector<8x128xf32>
    %1 = arith.truncf %0 : vector<8x128xf32> to vector<8x128xbf16>
    %c0_1 = arith.constant 0 : index
    %c0_2 = arith.constant 0 : index
    %2 = vector.load %arg3[%c0_1, %c0_2] : memref<128x128xbf16, #tpu.memory_space<vmem>>, vector<128x128xbf16>
    %cst = arith.constant dense<0.000000e+00> : vector<8x128xf32>
    %3 = tpu.matmul %1, %2, %cst {dimension_numbers = #tpu.dot_dimension_numbers<[1], [0], [0], [1], [0, 0, 1, 1], [], []>} : vector<8x128xbf16>, vector<128x128xbf16>, vector<8x128xf32> -> vector<8x128xf32>
    %c0_3 = arith.constant 0 : index
    %c0_4 = arith.constant 0 : index
    %4 = vector.load %arg4[%c0_3, %c0_4] : memref<1x128xf32, #tpu.memory_space<vmem>>, vector<1x128xf32>
    %5 = vector.broadcast %4 : vector<1x128xf32> to vector<8x128xf32>
    %6 = arith.addf %3, %5 : vector<8x128xf32>
    %cst_5 = arith.constant 0.000000e+00 : f32
    %7 = vector.broadcast %cst_5 : f32 to vector<8x128xf32>
    %8 = arith.maximumf %6, %7 : vector<8x128xf32>
    %9 = arith.truncf %8 : vector<8x128xf32> to vector<8x128xbf16>
    %c0_6 = arith.constant 0 : index
    %c0_7 = arith.constant 0 : index
    %10 = vector.load %arg5[%c0_6, %c0_7] : memref<128x128xbf16, #tpu.memory_space<vmem>>, vector<128x128xbf16>
    %cst_8 = arith.constant dense<0.000000e+00> : vector<8x128xf32>
    %11 = tpu.matmul %9, %10, %cst_8 {dimension_numbers = #tpu.dot_dimension_numbers<[1], [0], [0], [1], [0, 0, 1, 1], [], []>} : vector<8x128xbf16>, vector<128x128xbf16>, vector<8x128xf32> -> vector<8x128xf32>
    %c0_9 = arith.constant 0 : index
    %c0_10 = arith.constant 0 : index
    %12 = vector.load %arg6[%c0_9, %c0_10] : memref<1x128xf32, #tpu.memory_space<vmem>>, vector<1x128xf32>
    %13 = vector.broadcast %12 : vector<1x128xf32> to vector<8x128xf32>
    %14 = arith.addf %11, %13 : vector<8x128xf32>
    %cst_11 = arith.constant 0.000000e+00 : f32
    %15 = vector.broadcast %cst_11 : f32 to vector<8x128xf32>
    %16 = arith.maximumf %14, %15 : vector<8x128xf32>
    %17 = arith.truncf %16 : vector<8x128xf32> to vector<8x128xbf16>
    %c0_12 = arith.constant 0 : index
    %c0_13 = arith.constant 0 : index
    %18 = vector.load %arg7[%c0_12, %c0_13] : memref<128x128xbf16, #tpu.memory_space<vmem>>, vector<128x128xbf16>
    %cst_14 = arith.constant dense<0.000000e+00> : vector<8x128xf32>
    %19 = tpu.matmul %17, %18, %cst_14 {dimension_numbers = #tpu.dot_dimension_numbers<[1], [0], [0], [1], [0, 0, 1, 1], [], []>} : vector<8x128xbf16>, vector<128x128xbf16>, vector<8x128xf32> -> vector<8x128xf32>
    %c0_15 = arith.constant 0 : index
    %c0_16 = arith.constant 0 : index
    %20 = vector.load %arg8[%c0_15, %c0_16] : memref<1x128xf32, #tpu.memory_space<vmem>>, vector<1x128xf32>
    %21 = vector.broadcast %20 : vector<1x128xf32> to vector<8x128xf32>
    %22 = arith.addf %19, %21 : vector<8x128xf32>
    %c0_17 = arith.constant 0 : index
    %c0_18 = arith.constant 0 : index
    %23 = vector.load %arg9[%c0_17, %c0_18] : memref<8x128xf32, #tpu.memory_space<vmem>>, vector<8x128xf32>
    tpu.vector_store %arg9[%c0_17, %c0_18], %22 {strides = array<i32>} : memref<8x128xf32, #tpu.memory_space<vmem>>, vector<8x128xf32>,
    return
  }
  func.func @transform_0(%arg0: i32, %arg1: memref<1xi32, #tpu.memory_space<smem>>) -> (i32, i32) {
    %c0_i32 = arith.constant 0 : i32
    %c0_i32_0 = arith.constant 0 : i32
    return %arg0, %c0_i32 : i32, i32
  }
  func.func @transform_1(%arg0: i32, %arg1: memref<1xi32, #tpu.memory_space<smem>>) -> (i32, i32) {
    %c0_i32 = arith.constant 0 : i32
    %c0_i32_0 = arith.constant 0 : i32
    %c0_i32_1 = arith.constant 0 : i32
    return %c0_i32, %c0_i32_0 : i32, i32
  }
  func.func @transform_2(%arg0: i32, %arg1: memref<1xi32, #tpu.memory_space<smem>>) -> (i32, i32) {
    %c0_i32 = arith.constant 0 : i32
    %c0_i32_0 = arith.constant 0 : i32
    %c0_i32_1 = arith.constant 0 : i32
    return %c0_i32, %c0_i32_0 : i32, i32
  }
  func.func @transform_3(%arg0: i32, %arg1: memref<1xi32, #tpu.memory_space<smem>>) -> (i32, i32) {
    %c0_i32 = arith.constant 0 : i32
    %c0_i32_0 = arith.constant 0 : i32
    %c0_i32_1 = arith.constant 0 : i32
    return %c0_i32, %c0_i32_0 : i32, i32
  }
  func.func @transform_4(%arg0: i32, %arg1: memref<1xi32, #tpu.memory_space<smem>>) -> (i32, i32) {
    %c0_i32 = arith.constant 0 : i32
    %c0_i32_0 = arith.constant 0 : i32
    %c0_i32_1 = arith.constant 0 : i32
    return %c0_i32, %c0_i32_0 : i32, i32
  }
  func.func @transform_5(%arg0: i32, %arg1: memref<1xi32, #tpu.memory_space<smem>>) -> (i32, i32) {
    %c0_i32 = arith.constant 0 : i32
    %c0_i32_0 = arith.constant 0 : i32
    %c0_i32_1 = arith.constant 0 : i32
    return %c0_i32, %c0_i32_0 : i32, i32
  }
  func.func @transform_6(%arg0: i32, %arg1: memref<1xi32, #tpu.memory_space<smem>>) -> (i32, i32) {
    %c0_i32 = arith.constant 0 : i32
    %c0_i32_0 = arith.constant 0 : i32
    %c0_i32_1 = arith.constant 0 : i32
    return %c0_i32, %c0_i32_0 : i32, i32
  }
  func.func @transform_7(%arg0: i32, %arg1: memref<1xi32, #tpu.memory_space<smem>>) -> (i32, i32) {
    %c0_i32 = arith.constant 0 : i32
    %c0_i32_0 = arith.constant 0 : i32
    return %arg0, %c0_i32 : i32, i32
  }
}

</mosaic_0001>

<llo_original>
// kernel: tpu_custom_call.1
$region0: #{tpu_custom_call.1}
  #allocation0 [shape = 'u32[]', space=smem, size = 0x4, offset = 0x4, fixed_abs, tag = 'smem constant byte address 0x4 - core index']
  #allocation1 [shape = 'u32[72,128]{1,0:T(1,128)}', space=vmem, size = 0x9000, scoped, tag = 'internal scratch']
  #allocation2 [shape = 's32[1]{0}', space=sflag, size = 0x4, scoped, tag = 'scoped memory for tpu_custom_call.1']
  #allocation3 [shape = 's32[1]{0:T(128)S(6)}', space=smem, size = 0x200, scoped, tag = 'prefetched SMEM operand 0']
  %s0 = inlined_call_operand.<no memory space> [shape: s32[1], index: 0, kind: input, shape index: {}]
  %s1 = inlined_call_operand.hbm [shape: f32[8,128], index: 1, kind: input, shape index: {}]
  %s2 = inlined_call_operand.hbm [shape: bf16[128,128], index: 2, kind: input, shape index: {}]
  %s3 = inlined_call_operand.vmem [shape: f32[1,128], index: 3, kind: input, shape index: {}]
  %s4 = inlined_call_operand.hbm [shape: bf16[128,128], index: 4, kind: input, shape index: {}]
  %s5 = inlined_call_operand.vmem [shape: f32[1,128], index: 5, kind: input, shape index: {}]
  %s6 = inlined_call_operand.hbm [shape: bf16[128,128], index: 6, kind: input, shape index: {}]
  %s7 = inlined_call_operand.vmem [shape: f32[1,128], index: 7, kind: input, shape index: {}]
  %s8 = inlined_call_operand.hbm [shape: f32[8,128], index: 8, kind: output, shape index: {}]
  %s9 = sld [smem:[#allocation0]]
  $region54: #{tpu_custom_call.1} parent=0
    _
  %s11 = ssub.s32 1, %s9
  %s12 = scalar_select 0, %s11, %s9
  %13 = sst [smem:[#allocation3]] %s0
  $region1: #{tpu_custom_call.1} parent=0
    #allocation4 [shape = 'u8[4096]{0}', space=vmem, size = 0x1000, scoped, tag = 'input window, operand 1, single buffered']
    #allocation5 [shape = 's32[1]{0}', space=sflag, size = 0x4, scoped, tag = 'scoped memory for tpu_custom_call.1']
    #allocation6 [shape = 's32[1]{0}', space=sflag, size = 0x4, scoped, tag = 'scoped memory for tpu_custom_call.1']
    #allocation7 [shape = 'u8[32768]{0}', space=vmem, size = 0x8000, scoped, tag = 'input window, operand 2, single buffered']
    #allocation8 [shape = 's32[1]{0}', space=sflag, size = 0x4, scoped, tag = 'scoped memory for tpu_custom_call.1']
    #allocation9 [shape = 'u8[32768]{0}', space=vmem, size = 0x8000, scoped, tag = 'input window, operand 4, single buffered']
    #allocation10 [shape = 'u8[32768]{0}', space=vmem, size = 0x8000, scoped, tag = 'input window, operand 6, single buffered']
    #allocation11 [shape = 's32[1]{0}', space=sflag, size = 0x4, scoped, tag = 'scoped memory for tpu_custom_call.1']
    #allocation12 [shape = 'u8[4096]{0}', space=vmem, size = 0x1000, scoped, tag = 'output window, operand 0, single buffered']
    %14 = vsyncpa [#allocation5], 0
    %15 = vsyncpa [#allocation8], 0
    %16 = vsyncpa [#allocation11], 0
    %17 = vsyncpa [#allocation6], 0
    // Predicated region
    $region2: #{tpu_custom_call.1} parent=1 // pred_check
      _
    $region3: #{tpu_custom_call.1} parent=1 // pred_check_branch
      %19 = sbr.rel (0) target = $region5
    $region4: #{tpu_custom_call.1} parent=1 // pred_region
      %21 = vsyncadd [#allocation5], 0
      %s23 = sshll.u32 %s1, 4
      %s24 = int_to_ptr.hbm [resolvable:$true] %s23
      %s25 = sshll.u32 [#allocation4], 4
      %s26 = int_to_ptr.vmem [resolvable:$true] %s25
      %28 = dma.hbm_to_vmem [thread:$0]  %s24, 128, %s26, [#allocation5]
    $region5: #{tpu_custom_call.1} parent=1 // pred_fallthru
      _
    // Predicated region
    $region6: #{tpu_custom_call.1} parent=1 // pred_check
      _
    $region7: #{tpu_custom_call.1} parent=1 // pred_check_branch
      %30 = sbr.rel (0) target = $region9
    $region8: #{tpu_custom_call.1} parent=1 // pred_region
      %32 = vsyncadd [#allocation8], 0
      %s33 = sshll.u32 %s2, 4
      %s34 = int_to_ptr.hbm [resolvable:$true] %s33
      %s35 = sshll.u32 [#allocation7], 4
      %s36 = int_to_ptr.vmem [resolvable:$true] %s35
      %41 = dma.hbm_to_vmem [thread:$0]  %s34, 1024, %s36, [#allocation8], 64, 64, 4
    $region9: #{tpu_custom_call.1} parent=1 // pred_fallthru
      _
    // Predicated region
    $region10: #{tpu_custom_call.1} parent=1 // pred_check
      _
    $region11: #{tpu_custom_call.1} parent=1 // pred_check_branch
      %43 = sbr.rel (0) target = $region13
    $region12: #{tpu_custom_call.1} parent=1 // pred_region
      _
    $region13: #{tpu_custom_call.1} parent=1 // pred_fallthru
      _
    // Predicated region
    $region14: #{tpu_custom_call.1} parent=1 // pred_check
      _
    $region15: #{tpu_custom_call.1} parent=1 // pred_check_branch
      %45 = sbr.rel (0) target = $region17
    $region16: #{tpu_custom_call.1} parent=1 // pred_region
      %47 = vsyncadd [#allocation8], 0
      %s48 = sshll.u32 %s4, 4
      %s49 = int_to_ptr.hbm [resolvable:$true] %s48
      %s50 = sshll.u32 [#allocation9], 4
      %s51 = int_to_ptr.vmem [resolvable:$true] %s50
      %56 = dma.hbm_to_vmem [thread:$0]  %s49, 1024, %s51, [#allocation8], 64, 64, 4
    $region17: #{tpu_custom_call.1} parent=1 // pred_fallthru
      _
    // Predicated region
    $region18: #{tpu_custom_call.1} parent=1 // pred_check
      _
    $region19: #{tpu_custom_call.1} parent=1 // pred_check_branch
      %58 = sbr.rel (0) target = $region21
    $region20: #{tpu_custom_call.1} parent=1 // pred_region
      _
    $region21: #{tpu_custom_call.1} parent=1 // pred_fallthru
      _
    // Predicated region
    $region22: #{tpu_custom_call.1} parent=1 // pred_check
      _
    $region23: #{tpu_custom_call.1} parent=1 // pred_check_branch
      %60 = sbr.rel (0) target = $region25
    $region24: #{tpu_custom_call.1} parent=1 // pred_region
      %62 = vsyncadd [#allocation11], 0
      %s63 = sshll.u32 %s6, 4
      %s64 = int_to_ptr.hbm [resolvable:$true] %s63
      %s65 = sshll.u32 [#allocation10], 4
      %s66 = int_to_ptr.vmem [resolvable:$true] %s65
      %71 = dma.hbm_to_vmem [thread:$0]  %s64, 1024, %s66, [#allocation11], 64, 64, 4
    $region25: #{tpu_custom_call.1} parent=1 // pred_fallthru
      _
    // Predicated region
    $region26: #{tpu_custom_call.1} parent=1 // pred_check
      _
    $region27: #{tpu_custom_call.1} parent=1 // pred_check_branch
      %73 = sbr.rel (0) target = $region29
    $region28: #{tpu_custom_call.1} parent=1 // pred_region
      _
    $region29: #{tpu_custom_call.1} parent=1 // pred_fallthru
      _
    // Predicated region
    $region30: #{tpu_custom_call.1} parent=1 // pred_check
      _
    $region31: #{tpu_custom_call.1} parent=1 // pred_check_branch
      %75 = sbr.rel (0) target = $region33
    $region32: #{tpu_custom_call.1} parent=1 // pred_region
      %77 = dma.done [#allocation5], 128
    $region33: #{tpu_custom_call.1} parent=1 // pred_fallthru
      _
    // Predicated region
    $region34: #{tpu_custom_call.1} parent=1 // pred_check
      _
    $region35: #{tpu_custom_call.1} parent=1 // pred_check_branch
      %79 = sbr.rel (0) target = $region37
    $region36: #{tpu_custom_call.1} parent=1 // pred_region
      %81 = dma.done [#allocation8], 1024
    $region37: #{tpu_custom_call.1} parent=1 // pred_fallthru
      _
    // Predicated region
    $region38: #{tpu_custom_call.1} parent=1 // pred_check
      _
    $region39: #{tpu_custom_call.1} parent=1 // pred_check_branch
      %83 = sbr.rel (0) target = $region41
    $region40: #{tpu_custom_call.1} parent=1 // pred_region
      %85 = dma.done [#allocation8], 1024
    $region41: #{tpu_custom_call.1} parent=1 // pred_fallthru
      _
    // Predicated region
    $region42: #{tpu_custom_call.1} parent=1 // pred_check
      _
    $region43: #{tpu_custom_call.1} parent=1 // pred_check_branch
      %87 = sbr.rel (0) target = $region45
    $region44: #{tpu_custom_call.1} parent=1 // pred_region
      %89 = dma.done [#allocation11], 1024
    $region45: #{tpu_custom_call.1} parent=1 // pred_fallthru
      _
    %v90 = vld [vmem:[#allocation4] sm:$0xff]
    %v91 = vpack.c.bf16 %v90, %v90
    %v92 = vld [vmem:[#allocation7] sm:$0xf]
    %v93 = vld [vmem:[#allocation7 + $0x4] sm:$0xf]
    %v94 = vld [vmem:[#allocation7 + $0x8] sm:$0xf]
    %v95 = vld [vmem:[#allocation7 + $0xc] sm:$0xf]
    %v96 = vld [vmem:[#allocation7 + $0x10] sm:$0xf]
    %v97 = vld [vmem:[#allocation7 + $0x14] sm:$0xf]
    %v98 = vld [vmem:[#allocation7 + $0x18] sm:$0xf]
    %v99 = vld [vmem:[#allocation7 + $0x1c] sm:$0xf]
    %v100 = vld [vmem:[#allocation7 + $0x20] sm:$0xf]
    %v101 = vld [vmem:[#allocation7 + $0x24] sm:$0xf]
    %v102 = vld [vmem:[#allocation7 + $0x28] sm:$0xf]
    %v103 = vld [vmem:[#allocation7 + $0x2c] sm:$0xf]
    %v104 = vld [vmem:[#allocation7 + $0x30] sm:$0xf]
    %v105 = vld [vmem:[#allocation7 + $0x34] sm:$0xf]
    %v106 = vld [vmem:[#allocation7 + $0x38] sm:$0xf]
    %v107 = vld [vmem:[#allocation7 + $0x3c] sm:$0xf]
    %v108 = vld [vmem:[%s3] sm:$0x1]
    %v110 = vperm.slane %v108, 0
    %v128 = vunpack.c.l.b16 %v92
    %v129 = vunpack.c.l.b16 %v93
    %v130 = vunpack.c.l.b16 %v94
    %v131 = vunpack.c.l.b16 %v95
    %v132 = vunpack.c.l.b16 %v96
    %v133 = vunpack.c.l.b16 %v97
    %v134 = vunpack.c.l.b16 %v98
    %v135 = vunpack.c.l.b16 %v99
    %v136 = vunpack.c.l.b16 %v100
    %v137 = vunpack.c.l.b16 %v101
    %v138 = vunpack.c.l.b16 %v102
    %v139 = vunpack.c.l.b16 %v103
    %v140 = vunpack.c.l.b16 %v104
    %v141 = vunpack.c.l.b16 %v105
    %v142 = vunpack.c.l.b16 %v106
    %v143 = vunpack.c.l.b16 %v107
    %v144 = vpack.c.b16 %v129, %v128
    %v145 = vpack.c.b16 %v131, %v130
    %v146 = vpack.c.b16 %v133, %v132
    %v147 = vpack.c.b16 %v135, %v134
    %v148 = vpack.c.b16 %v137, %v136
    %v149 = vpack.c.b16 %v139, %v138
    %v150 = vpack.c.b16 %v141, %v140
    %v151 = vpack.c.b16 %v143, %v142
    %160 = vmatpush.bf16.msra.mxu0 %v151
    %161 = vmatpush.bf16.msra.mxu0 %v150
    %162 = vmatpush.bf16.msra.mxu0 %v149
    %163 = vmatpush.bf16.msra.mxu0 %v148
    %164 = vmatpush.bf16.msra.mxu0 %v147
    %165 = vmatpush.bf16.msra.mxu0 %v146
    %166 = vmatpush.bf16.msra.mxu0 %v145
    %167 = vmatpush.bf16.msra.mxu0 %v144
    %168 = vmatmul.bf16.gmra.mxu0 %v91
    %v169 = vpop.f32.mrf.mxu0
    %v170 = vadd.f32 %v110, %v169
    %v171 = vpop.f32.mrf.mxu0
    %172 = vdwg.mxu0
    %v173 = vmax.f32 %v170, 0.0
    %v174 = vpack.c.bf16 %v173, %v173
    %v175 = vld [vmem:[#allocation9] sm:$0xf]
    %v176 = vld [vmem:[#allocation9 + $0x4] sm:$0xf]
    %v177 = vld [vmem:[#allocation9 + $0x8] sm:$0xf]
    %v178 = vld [vmem:[#allocation9 + $0xc] sm:$0xf]
    %v179 = vld [vmem:[#allocation9 + $0x10] sm:$0xf]
    %v180 = vld [vmem:[#allocation9 + $0x14] sm:$0xf]
    %v181 = vld [vmem:[#allocation9 + $0x18] sm:$0xf]
    %v182 = vld [vmem:[#allocation9 + $0x1c] sm:$0xf]
    %v183 = vld [vmem:[#allocation9 + $0x20] sm:$0xf]
    %v184 = vld [vmem:[#allocation9 + $0x24] sm:$0xf]
    %v185 = vld [vmem:[#allocation9 + $0x28] sm:$0xf]
    %v186 = vld [vmem:[#allocation9 + $0x2c] sm:$0xf]
    %v187 = vld [vmem:[#allocation9 + $0x30] sm:$0xf]
    %v188 = vld [vmem:[#allocation9 + $0x34] sm:$0xf]
    %v189 = vld [vmem:[#allocation9 + $0x38] sm:$0xf]
    %v190 = vld [vmem:[#allocation9 + $0x3c] sm:$0xf]
    %v191 = vld [vmem:[%s5] sm:$0x1]
    %v193 = vperm.slane %v191, 0
    %v211 = vunpack.c.l.b16 %v175
    %v212 = vunpack.c.l.b16 %v176
    %v213 = vunpack.c.l.b16 %v177
    %v214 = vunpack.c.l.b16 %v178
    %v215 = vunpack.c.l.b16 %v179
    %v216 = vunpack.c.l.b16 %v180
    %v217 = vunpack.c.l.b16 %v181
    %v218 = vunpack.c.l.b16 %v182
    %v219 = vunpack.c.l.b16 %v183
    %v220 = vunpack.c.l.b16 %v184
    %v221 = vunpack.c.l.b16 %v185
    %v222 = vunpack.c.l.b16 %v186
    %v223 = vunpack.c.l.b16 %v187
    %v224 = vunpack.c.l.b16 %v188
    %v225 = vunpack.c.l.b16 %v189
    %v226 = vunpack.c.l.b16 %v190
    %v227 = vpack.c.b16 %v212, %v211
    %v228 = vpack.c.b16 %v214, %v213
    %v229 = vpack.c.b16 %v216, %v215
    %v230 = vpack.c.b16 %v218, %v217
    %v231 = vpack.c.b16 %v220, %v219
    %v232 = vpack.c.b16 %v222, %v221
    %v233 = vpack.c.b16 %v224, %v223
    %v234 = vpack.c.b16 %v226, %v225
    %243 = vmatpush.bf16.msra.mxu0 %v234
    %244 = vmatpush.bf16.msra.mxu0 %v233
    %245 = vmatpush.bf16.msra.mxu0 %v232
    %246 = vmatpush.bf16.msra.mxu0 %v231
    %247 = vmatpush.bf16.msra.mxu0 %v230
    %248 = vmatpush.bf16.msra.mxu0 %v229
    %249 = vmatpush.bf16.msra.mxu0 %v228
    %250 = vmatpush.bf16.msra.mxu0 %v227
    %251 = vmatmul.bf16.gmra.mxu0 %v174
    %v252 = vpop.f32.mrf.mxu0
    %v253 = vadd.f32 %v193, %v252
    %v254 = vpop.f32.mrf.mxu0
    %255 = vdwg.mxu0
    %v256 = vmax.f32 %v253, 0.0
    %v257 = vpack.c.bf16 %v256, %v256
    %v258 = vld [vmem:[#allocation10] sm:$0xf]
    %v259 = vld [vmem:[#allocation10 + $0x4] sm:$0xf]
    %v260 = vld [vmem:[#allocation10 + $0x8] sm:$0xf]
    %v261 = vld [vmem:[#allocation10 + $0xc] sm:$0xf]
    %v262 = vld [vmem:[#allocation10 + $0x10] sm:$0xf]
    %v263 = vld [vmem:[#allocation10 + $0x14] sm:$0xf]
    %v264 = vld [vmem:[#allocation10 + $0x18] sm:$0xf]
    %v265 = vld [vmem:[#allocation10 + $0x1c] sm:$0xf]
    %v266 = vld [vmem:[#allocation10 + $0x20] sm:$0xf]
    %v267 = vld [vmem:[#allocation10 + $0x24] sm:$0xf]
    %v268 = vld [vmem:[#allocation10 + $0x28] sm:$0xf]
    %v269 = vld [vmem:[#allocation10 + $0x2c] sm:$0xf]
    %v270 = vld [vmem:[#allocation10 + $0x30] sm:$0xf]
    %v271 = vld [vmem:[#allocation10 + $0x34] sm:$0xf]
    %v272 = vld [vmem:[#allocation10 + $0x38] sm:$0xf]
    %v273 = vld [vmem:[#allocation10 + $0x3c] sm:$0xf]
    %v274 = vld [vmem:[%s7] sm:$0x1]
    %v276 = vperm.slane %v274, 0
    %v294 = vunpack.c.l.b16 %v258
    %v295 = vunpack.c.l.b16 %v259
    %v296 = vunpack.c.l.b16 %v260
    %v297 = vunpack.c.l.b16 %v261
    %v298 = vunpack.c.l.b16 %v262
    %v299 = vunpack.c.l.b16 %v263
    %v300 = vunpack.c.l.b16 %v264
    %v301 = vunpack.c.l.b16 %v265
    %v302 = vunpack.c.l.b16 %v266
    %v303 = vunpack.c.l.b16 %v267
    %v304 = vunpack.c.l.b16 %v268
    %v305 = vunpack.c.l.b16 %v269
    %v306 = vunpack.c.l.b16 %v270
    %v307 = vunpack.c.l.b16 %v271
    %v308 = vunpack.c.l.b16 %v272
    %v309 = vunpack.c.l.b16 %v273
    %v310 = vpack.c.b16 %v295, %v294
    %v311 = vpack.c.b16 %v297, %v296
    %v312 = vpack.c.b16 %v299, %v298
    %v313 = vpack.c.b16 %v301, %v300
    %v314 = vpack.c.b16 %v303, %v302
    %v315 = vpack.c.b16 %v305, %v304
    %v316 = vpack.c.b16 %v307, %v306
    %v317 = vpack.c.b16 %v309, %v308
    %326 = vmatpush.bf16.msra.mxu0 %v317
    %327 = vmatpush.bf16.msra.mxu0 %v316
    %328 = vmatpush.bf16.msra.mxu0 %v315
    %329 = vmatpush.bf16.msra.mxu0 %v314
    %330 = vmatpush.bf16.msra.mxu0 %v313
    %331 = vmatpush.bf16.msra.mxu0 %v312
    %332 = vmatpush.bf16.msra.mxu0 %v311
    %333 = vmatpush.bf16.msra.mxu0 %v310
    %334 = vmatmul.bf16.gmra.mxu0 %v257
    %v335 = vpop.f32.mrf.mxu0
    %v336 = vadd.f32 %v276, %v335
    %v337 = vpop.f32.mrf.mxu0
    %338 = vdwg.mxu0
    %339 = vst [vmem:[#allocation12] sm:$0xff] %v336
    // Predicated region
    $region46: #{tpu_custom_call.1} parent=1 // pred_check
      _
    $region47: #{tpu_custom_call.1} parent=1 // pred_check_branch
      %341 = sbr.rel (0) target = $region49
    $region48: #{tpu_custom_call.1} parent=1 // pred_region
      %343 = vsyncadd [#allocation6], 0
      %s345 = sshll.u32 [#allocation12], 4
      %s346 = int_to_ptr.vmem [resolvable:$true] %s345
      %s347 = sshll.u32 %s8, 4
      %s348 = int_to_ptr.hbm [resolvable:$true] %s347
      %350 = dma.vmem_to_hbm [thread:$0]  %s346, 128, %s348, [#allocation6]
    $region49: #{tpu_custom_call.1} parent=1 // pred_fallthru
      _
    // Predicated region
    $region50: #{tpu_custom_call.1} parent=1 // pred_check
      _
    $region51: #{tpu_custom_call.1} parent=1 // pred_check_branch
      %352 = sbr.rel (0) target = $region53
    $region52: #{tpu_custom_call.1} parent=1 // pred_region
      %354 = dma.done [#allocation6], 128
    $region53: #{tpu_custom_call.1} parent=1 // pred_fallthru
      _
    %355 = vsyncpa [#allocation5], 1
    %356 = vsyncpa [#allocation8], 1
    %357 = vsyncpa [#allocation11], 1
    %358 = vsyncpa [#allocation6], 1

</llo_original>
